<compile_context>
chip_gen: v7x
topology: tpu7x:2x2x1
jax: 0.10.0
libtpu: 0.0.40
codegen_flags: <defaults>
</compile_context>

<pallas_src>
import jax
import jax.numpy as jnp
from jax.experimental import pallas as pl
from jax.experimental.pallas import tpu as pltpu


def _round_up(x, m):
    return ((x + m - 1) // m) * m


def _choose_tm(M, tm=None):
    """M-tile: multiple of 8, >=2 grid steps when possible, capped at 256."""
    if tm is not None:
        tm = max(1, int(tm))
        if M < 8:
            return M
        return min(_round_up(tm, 8), _round_up(M, 8))
    if M < 8:
        return M  # full-dim block is always legal
    # >=2 grid steps (v7x 2-TC sharding), cap at 256 (vreg pressure: a single
    # 256x128 f32 activation is already 32/64 vregs).
    target = _round_up(pl.cdiv(M, 2), 8)
    return max(8, min(256, target))


def _default_storage_dtype(widths):
    """bf16 storage only once widths approach 128+ and only on v6e/v7x."""
    if max(widths) < 128:
        return jnp.float32
    try:
        kind = jax.devices()[0].device_kind.lower()
    except Exception:
        kind = ""
    if ("v6" in kind) or ("v7" in kind):
        return jnp.bfloat16
    return jnp.float32  # v5e: no bf16 VPU/EUP -> f32 is the fast simple path


def _make_fused_mlp_kernel(num_layers):
    """h = tanh(...tanh(tanh(x@w0+b0)@w1+b1)...) fully in VMEM/vregs."""

    def kernel(x_ref, *refs):
        # refs = (w0, b0, w1, b1, ..., w_{L-1}, b_{L-1}, out)
        o_ref = refs[-1]
        h = x_ref[...]
        for l in range(num_layers):
            w = refs[2 * l][...]
            b = refs[2 * l + 1][...]          # bias kept f32
            acc = jnp.dot(h.astype(w.dtype), w,
                          preferred_element_type=jnp.float32)
            h = jnp.tanh(acc + b)             # bias + tanh in f32
        o_ref[...] = h.astype(o_ref.dtype)

    return kernel


def mlp_forward_fused(x, params, *, tm=None, storage_dtype=None,
                      pad_out_lanes=None):
    """Run the whole MLP (list of (w, b)) in a single Pallas call.

    Only the batch axis is gridded ("parallel"); every weight/bias stays
    resident in VMEM across the whole call.
    """
    M, K0 = x.shape
    num_layers = len(params)
    widths = [K0] + [w.shape[1] for w, _ in params]
    n_out = widths[-1]
    out_dtype = x.dtype

    if storage_dtype is None:
        storage_dtype = _default_storage_dtype(widths)

    tm = _choose_tm(M, tm)
    grid = (pl.cdiv(M, tm),)

    # Lane-dense output store only when the kernel is store/overhead-bound
    # (large batch) and the final width is lane-sparse.
    if pad_out_lanes is None:
        pad_out_lanes = (n_out % 128 != 0) and (M >= 1024)
    n_out_padded = _round_up(n_out, 128) if pad_out_lanes else n_out

    # Cast storage at the boundary; accumulation stays f32 in-kernel.
    x_in = x.astype(storage_dtype)
    ws, bs = [], []
    for li, (w, b) in enumerate(params):
        w = w.astype(storage_dtype)
        b = b.astype(jnp.float32)
        if pad_out_lanes and li == num_layers - 1:
            w = jnp.pad(w, ((0, 0), (0, n_out_padded - n_out)))
            b = jnp.pad(b, ((0, 0), (0, n_out_padded - n_out)))
        ws.append(w)
        bs.append(b)

    param_bytes = sum(int(w.size) * w.dtype.itemsize +
                      int(b.size) * b.dtype.itemsize
                      for w, b in zip(ws, bs))
    # Constant-index full-array blocks are double-buffered by default; once the
    # resident params are big, single-buffer them to halve their VMEM footprint.
    single_buffer_weights = param_bytes > (4 << 20)

    in_specs = [pl.BlockSpec((tm, K0), lambda i: (i, 0))]
    flat_args = [x_in]
    for w, b in zip(ws, bs):
        if single_buffer_weights:
            in_specs.append(pl.BlockSpec(w.shape, lambda i: (0, 0),
                                         pipeline_mode=pl.Buffered(1)))
            in_specs.append(pl.BlockSpec(b.shape, lambda i: (0, 0),
                                         pipeline_mode=pl.Buffered(1)))
        else:
            in_specs.append(pl.BlockSpec(w.shape, lambda i: (0, 0)))
            in_specs.append(pl.BlockSpec(b.shape, lambda i: (0, 0)))
        flat_args += [w, b]

    out_specs = pl.BlockSpec((tm, n_out_padded), lambda i: (i, 0))

    # Cost estimate: at these widths the EUP (tanh) slot, not the MXU, binds
    # once batch is large; the estimate also helps XLA schedule neighbors.
    flops = 2 * M * sum(ki * ko for ki, ko in zip(widths[:-1], widths[1:]))
    transcendentals = M * sum(widths[1:])
    bytes_accessed = (int(x_in.size) * x_in.dtype.itemsize + param_bytes +
                      M * n_out_padded * jnp.dtype(out_dtype).itemsize)
    cost = pl.CostEstimate(flops=flops,
                           transcendentals=transcendentals,
                           bytes_accessed=bytes_accessed)

    # VMEM budget: resident params (x2 if double-buffered) + pipelined in/out
    # activation tiles. Only raise the scoped limit when we actually need it,
    # and leave headroom vs v7x's 64 MiB physical per-TC VMEM.
    buf_factor = 1 if single_buffer_weights else 2
    act_bytes = 2 * 2 * tm * max(widths) * 4  # f32 upper bound, in+out, 2 bufs
    est_vmem = buf_factor * param_bytes + act_bytes
    vmem_limit_bytes = None
    if est_vmem > (24 << 20):
        vmem_limit_bytes = int(min(est_vmem * 5 // 4, 48 << 20))
        # TODO(synk): if est_vmem exceeds ~48 MiB, weights no longer fit
        # resident on v7x; switch to a K/N-tiled weight pipeline instead.

    out = pl.pallas_call(
        _make_fused_mlp_kernel(num_layers),
        out_shape=jax.ShapeDtypeStruct((M, n_out_padded), out_dtype),
        grid_spec=pl.GridSpec(grid=grid, in_specs=in_specs,
                              out_specs=out_specs),
        compiler_params=pltpu.CompilerParams(
            dimension_semantics=("parallel",),
            vmem_limit_bytes=vmem_limit_bytes,
        ),
        cost_estimate=cost,
    )(*flat_args)

    if pad_out_lanes:
        out = out[:, :n_out]
    return out


def init_mlp_params(key, layers, dtype=jnp.float32):
    """Deterministic init mimicking nn.Linear defaults (uniform +/- 1/sqrt(fan_in))."""
    params = []
    for i in range(len(layers) - 1):
        fan_in, fan_out = layers[i], layers[i + 1]
        key, wk, bk = jax.random.split(key, 3)
        bound = 1.0 / jnp.sqrt(fan_in)
        w = jax.random.uniform(wk, (fan_in, fan_out), dtype, -bound, bound)
        b = jax.random.uniform(bk, (1, fan_out), dtype, -bound, bound)
        params.append((w, b))
    return params


@jax.jit
def mlp_forward(x, params):
    # Sequential(Linear, Tanh, Linear, Tanh, ...): one fused Pallas call.
    return mlp_forward_fused(x, params)


if __name__ == "__main__":
    key = jax.random.PRNGKey(0)
    layers = [32, 64, 64, 16]   # args.layers stand-in
    batch = 8

    kx, kp = jax.random.split(key)
    x = jax.random.normal(kx, (batch, layers[0]), jnp.float32)
    params = init_mlp_params(kp, layers)

    out = mlp_forward(x, params)
    jax.block_until_ready(out)

    # Pure-JAX reference check (f32 path is auto-selected at these toy widths;
    # the auto-bf16 path for wide layers on v6e/v7x would need looser tols).
    ref = x
    for w, b in params:
        ref = jnp.tanh(ref @ w + b)
    assert out.shape == (batch, layers[-1])
    assert jnp.allclose(out, ref, atol=1e-5, rtol=1e-5), \
        float(jnp.max(jnp.abs(out - ref)))

    print("KERNEL_OK")
</pallas_src>

<mosaic_0001>
module attributes {stable_mosaic.version = 11 : i64} {
  func.func @kernel(%arg0: i32, %arg1: memref<8x32xf32, #tpu.memory_space<vmem>>, %arg2: memref<32x64xf32, #tpu.memory_space<vmem>>, %arg3: memref<1x64xf32, #tpu.memory_space<vmem>>, %arg4: memref<64x64xf32, #tpu.memory_space<vmem>>, %arg5: memref<1x64xf32, #tpu.memory_space<vmem>>, %arg6: memref<64x16xf32, #tpu.memory_space<vmem>>, %arg7: memref<1x16xf32, #tpu.memory_space<vmem>>, %arg8: memref<8x16xf32, #tpu.memory_space<vmem>>) attributes {dimension_semantics = [#tpu.dimension_semantics<parallel>], iteration_bounds = array<i64: 1>, scalar_prefetch = 0 : i64, scratch_operands = 0 : i64, tpu.core_type = #tpu.core_type<tc>, window_params = [{transform_indices = @transform_0, window_bounds = array<i64: 8, 32>}, {pipeline_mode = #tpu.pipeline_mode<synchronous>, transform_indices = @transform_1, window_bounds = array<i64: 32, 64>}, {pipeline_mode = #tpu.pipeline_mode<synchronous>, transform_indices = @transform_2, window_bounds = array<i64: 1, 64>}, {pipeline_mode = #tpu.pipeline_mode<synchronous>, transform_indices = @transform_3, window_bounds = array<i64: 64, 64>}, {pipeline_mode = #tpu.pipeline_mode<synchronous>, transform_indices = @transform_4, window_bounds = array<i64: 1, 64>}, {pipeline_mode = #tpu.pipeline_mode<synchronous>, transform_indices = @transform_5, window_bounds = array<i64: 64, 16>}, {pipeline_mode = #tpu.pipeline_mode<synchronous>, transform_indices = @transform_6, window_bounds = array<i64: 1, 16>}, {transform_indices = @transform_7, window_bounds = array<i64: 8, 16>}]} {
    %c0 = arith.constant 0 : index
    %c0_0 = arith.constant 0 : index
    %0 = vector.load %arg1[%c0, %c0_0] : memref<8x32xf32, #tpu.memory_space<vmem>>, vector<8x32xf32>
    %c0_1 = arith.constant 0 : index
    %c0_2 = arith.constant 0 : index
    %1 = vector.load %arg2[%c0_1, %c0_2] : memref<32x64xf32, #tpu.memory_space<vmem>>, vector<32x64xf32>
    %c0_3 = arith.constant 0 : index
    %c0_4 = arith.constant 0 : index
    %2 = vector.load %arg3[%c0_3, %c0_4] : memref<1x64xf32, #tpu.memory_space<vmem>>, vector<1x64xf32>
    %cst = arith.constant dense<0.000000e+00> : vector<8x64xf32>
    %3 = tpu.matmul %0, %1, %cst {dimension_numbers = #tpu.dot_dimension_numbers<[1], [0], [0], [1], [0, 0, 1, 1], [], []>} : vector<8x32xf32>, vector<32x64xf32>, vector<8x64xf32> -> vector<8x64xf32>
    %4 = vector.broadcast %2 : vector<1x64xf32> to vector<8x64xf32>
    %5 = arith.addf %3, %4 : vector<8x64xf32>
    %6 = math.tanh %5 : vector<8x64xf32>
    %c0_5 = arith.constant 0 : index
    %c0_6 = arith.constant 0 : index
    %7 = vector.load %arg4[%c0_5, %c0_6] : memref<64x64xf32, #tpu.memory_space<vmem>>, vector<64x64xf32>
    %c0_7 = arith.constant 0 : index
    %c0_8 = arith.constant 0 : index
    %8 = vector.load %arg5[%c0_7, %c0_8] : memref<1x64xf32, #tpu.memory_space<vmem>>, vector<1x64xf32>
    %cst_9 = arith.constant dense<0.000000e+00> : vector<8x64xf32>
    %9 = tpu.matmul %6, %7, %cst_9 {dimension_numbers = #tpu.dot_dimension_numbers<[1], [0], [0], [1], [0, 0, 1, 1], [], []>} : vector<8x64xf32>, vector<64x64xf32>, vector<8x64xf32> -> vector<8x64xf32>
    %10 = vector.broadcast %8 : vector<1x64xf32> to vector<8x64xf32>
    %11 = arith.addf %9, %10 : vector<8x64xf32>
    %12 = math.tanh %11 : vector<8x64xf32>
    %c0_10 = arith.constant 0 : index
    %c0_11 = arith.constant 0 : index
    %13 = vector.load %arg6[%c0_10, %c0_11] : memref<64x16xf32, #tpu.memory_space<vmem>>, vector<64x16xf32>
    %c0_12 = arith.constant 0 : index
    %c0_13 = arith.constant 0 : index
    %14 = vector.load %arg7[%c0_12, %c0_13] : memref<1x16xf32, #tpu.memory_space<vmem>>, vector<1x16xf32>
    %cst_14 = arith.constant dense<0.000000e+00> : vector<8x16xf32>
    %15 = tpu.matmul %12, %13, %cst_14 {dimension_numbers = #tpu.dot_dimension_numbers<[1], [0], [0], [1], [0, 0, 1, 1], [], []>} : vector<8x64xf32>, vector<64x16xf32>, vector<8x16xf32> -> vector<8x16xf32>
    %16 = vector.broadcast %14 : vector<1x16xf32> to vector<8x16xf32>
    %17 = arith.addf %15, %16 : vector<8x16xf32>
    %18 = math.tanh %17 : vector<8x16xf32>
    %c0_15 = arith.constant 0 : index
    %c0_16 = arith.constant 0 : index
    %19 = vector.load %arg8[%c0_15, %c0_16] : memref<8x16xf32, #tpu.memory_space<vmem>>, vector<8x16xf32>
    tpu.vector_store %arg8[%c0_15, %c0_16], %18 {strides = array<i32>} : memref<8x16xf32, #tpu.memory_space<vmem>>, vector<8x16xf32>,
    return
  }
  func.func @transform_0(%arg0: i32) -> (i32, i32) {
    %c0_i32 = arith.constant 0 : i32
    %c0_i32_0 = arith.constant 0 : i32
    return %arg0, %c0_i32 : i32, i32
  }
  func.func @transform_1(%arg0: i32) -> (i32, i32) {
    %c0_i32 = arith.constant 0 : i32
    %c0_i32_0 = arith.constant 0 : i32
    %c0_i32_1 = arith.constant 0 : i32
    return %c0_i32, %c0_i32_0 : i32, i32
  }
  func.func @transform_2(%arg0: i32) -> (i32, i32) {
    %c0_i32 = arith.constant 0 : i32
    %c0_i32_0 = arith.constant 0 : i32
    %c0_i32_1 = arith.constant 0 : i32
    return %c0_i32, %c0_i32_0 : i32, i32
  }
  func.func @transform_3(%arg0: i32) -> (i32, i32) {
    %c0_i32 = arith.constant 0 : i32
    %c0_i32_0 = arith.constant 0 : i32
    %c0_i32_1 = arith.constant 0 : i32
    return %c0_i32, %c0_i32_0 : i32, i32
  }
  func.func @transform_4(%arg0: i32) -> (i32, i32) {
    %c0_i32 = arith.constant 0 : i32
    %c0_i32_0 = arith.constant 0 : i32
    %c0_i32_1 = arith.constant 0 : i32
    return %c0_i32, %c0_i32_0 : i32, i32
  }
  func.func @transform_5(%arg0: i32) -> (i32, i32) {
    %c0_i32 = arith.constant 0 : i32
    %c0_i32_0 = arith.constant 0 : i32
    %c0_i32_1 = arith.constant 0 : i32
    return %c0_i32, %c0_i32_0 : i32, i32
  }
  func.func @transform_6(%arg0: i32) -> (i32, i32) {
    %c0_i32 = arith.constant 0 : i32
    %c0_i32_0 = arith.constant 0 : i32
    %c0_i32_1 = arith.constant 0 : i32
    return %c0_i32, %c0_i32_0 : i32, i32
  }
  func.func @transform_7(%arg0: i32) -> (i32, i32) {
    %c0_i32 = arith.constant 0 : i32
    %c0_i32_0 = arith.constant 0 : i32
    return %arg0, %c0_i32 : i32, i32
  }
}

</mosaic_0001>

<llo_original>
// kernel: mlp_forward.1
$region0: #{mlp_forward.1}
  #allocation0 [shape = 'u32[]', space=smem, size = 0x4, offset = 0x4, fixed_abs, tag = 'smem constant byte address 0x4 - core index']
  #allocation1 [shape = 'u32[144,128]{1,0:T(1,128)}', space=vmem, size = 0x12000, scoped, tag = 'internal scratch']
  %s0 = inlined_call_operand.vmem [shape: f32[8,32], index: 0, kind: input, shape index: {}]
  %s1 = inlined_call_operand.hbm [shape: f32[32,64], index: 1, kind: input, shape index: {}]
  %s2 = inlined_call_operand.vmem [shape: f32[1,64], index: 2, kind: input, shape index: {}]
  %s3 = inlined_call_operand.vmem [shape: f32[64,64], index: 3, kind: input, shape index: {}]
  %s4 = inlined_call_operand.vmem [shape: f32[1,64], index: 4, kind: input, shape index: {}]
  %s5 = inlined_call_operand.vmem [shape: f32[64,16], index: 5, kind: input, shape index: {}]
  %s6 = inlined_call_operand.vmem [shape: f32[1,16], index: 6, kind: input, shape index: {}]
  %s7 = inlined_call_operand.hbm [shape: f32[8,16], index: 7, kind: output, shape index: {}]
  %s8 = sld [smem:[#allocation0]]
  $region42: #{mlp_forward.1} parent=0
    _
  %s10 = ssub.s32 1, %s8
  %s11 = scalar_select 0, %s10, %s8
  $region1: #{mlp_forward.1} parent=0
    #allocation2 [shape = 'u8[16384]{0}', space=vmem, size = 0x4000, scoped, tag = 'input window, operand 1, single buffered']
    #allocation3 [shape = 's32[1]{0}', space=sflag, size = 0x4, scoped, tag = 'scoped memory for mlp_forward.1']
    #allocation4 [shape = 's32[1]{0}', space=sflag, size = 0x4, scoped, tag = 'scoped memory for mlp_forward.1']
    #allocation5 [shape = 'u8[4096]{0}', space=vmem, size = 0x1000, scoped, tag = 'output window, operand 0, single buffered']
    %12 = vsyncpa [#allocation3], 0
    %13 = vsyncpa [#allocation4], 0
    // Predicated region
    $region2: #{mlp_forward.1} parent=1 // pred_check
      _
    $region3: #{mlp_forward.1} parent=1 // pred_check_branch
      %15 = sbr.rel (0) target = $region5
    $region4: #{mlp_forward.1} parent=1 // pred_region
      _
    $region5: #{mlp_forward.1} parent=1 // pred_fallthru
      _
    // Predicated region
    $region6: #{mlp_forward.1} parent=1 // pred_check
      _
    $region7: #{mlp_forward.1} parent=1 // pred_check_branch
      %17 = sbr.rel (0) target = $region9
    $region8: #{mlp_forward.1} parent=1 // pred_region
      %s19 = ssub.s32 512, 512
      %20 = vsyncadd [#allocation3], %s19
      %s21 = sshll.u32 [#allocation2], 4
      %s22 = int_to_ptr.vmem [resolvable:$true] %s21
      %27 = dma.hbm_to_vmem [thread:$0]  %s1, 512, %s22, [#allocation3], 128, 128, 8
    $region9: #{mlp_forward.1} parent=1 // pred_fallthru
      _
    // Predicated region
    $region10: #{mlp_forward.1} parent=1 // pred_check
      _
    $region11: #{mlp_forward.1} parent=1 // pred_check_branch
      %29 = sbr.rel (0) target = $region13
    $region12: #{mlp_forward.1} parent=1 // pred_region
      _
    $region13: #{mlp_forward.1} parent=1 // pred_fallthru
      _
    // Predicated region
    $region14: #{mlp_forward.1} parent=1 // pred_check
      _
    $region15: #{mlp_forward.1} parent=1 // pred_check_branch
      %31 = sbr.rel (0) target = $region17
    $region16: #{mlp_forward.1} parent=1 // pred_region
      _
    $region17: #{mlp_forward.1} parent=1 // pred_fallthru
      _
    // Predicated region
    $region18: #{mlp_forward.1} parent=1 // pred_check
      _
    $region19: #{mlp_forward.1} parent=1 // pred_check_branch
      %33 = sbr.rel (0) target = $region21
    $region20: #{mlp_forward.1} parent=1 // pred_region
      _
    $region21: #{mlp_forward.1} parent=1 // pred_fallthru
      _
    // Predicated region
    $region22: #{mlp_forward.1} parent=1 // pred_check
      _
    $region23: #{mlp_forward.1} parent=1 // pred_check_branch
      %35 = sbr.rel (0) target = $region25
    $region24: #{mlp_forward.1} parent=1 // pred_region
      _
    $region25: #{mlp_forward.1} parent=1 // pred_fallthru
      _
    // Predicated region
    $region26: #{mlp_forward.1} parent=1 // pred_check
      _
    $region27: #{mlp_forward.1} parent=1 // pred_check_branch
      %37 = sbr.rel (0) target = $region29
    $region28: #{mlp_forward.1} parent=1 // pred_region
      _
    $region29: #{mlp_forward.1} parent=1 // pred_fallthru
      _
    // Predicated region
    $region30: #{mlp_forward.1} parent=1 // pred_check
      _
    $region31: #{mlp_forward.1} parent=1 // pred_check_branch
      %39 = sbr.rel (0) target = $region33
    $region32: #{mlp_forward.1} parent=1 // pred_region
      %40 = dma.done [#allocation3], 512
    $region33: #{mlp_forward.1} parent=1 // pred_fallthru
      _
    %v41 = vld [vmem:[%s0] sm:$0xff]
    %v42 = vld [vmem:[#allocation2] sm:$0xff]
    %v43 = vld [vmem:[#allocation2 + $0x8] sm:$0xff]
    %v44 = vld [vmem:[#allocation2 + $0x10] sm:$0xff]
    %v45 = vld [vmem:[#allocation2 + $0x18] sm:$0xff]
    %v46 = vld [vmem:[%s2] sm:$0x1]
    %v48 = vlaneseq
    %v49 = vshrl.u32 %v48, 7
    %v50 = vsub.s32 0, %v49
    %v51 = vrot.slane %v46, %v50
    %vm53 = vcmask 261120
    %v55 = vsel %vm53, %v41, 0
    %57 = vmatprep.subr.mxu0 0.0
    %58 = vmatpush1.msra.mxu0 %v42
    %59 = vmatprep.subr.mxu0 0.0
    %60 = vmatpush1.msra.mxu0 %v43
    %61 = vmatprep.subr.mxu0 0.0
    %62 = vmatpush1.msra.mxu0 %v44
    %63 = vmatprep.subr.mxu0 0.0
    %64 = vmatpush1.msra.mxu0 %v45
    %65 = vmatprep.subr.mxu0 0.0
    %66 = vmatpush1.msra.mxu0 0.0
    %67 = vmatprep.subr.mxu0 0.0
    %68 = vmatpush1.msra.mxu0 0.0
    %69 = vmatprep.subr.mxu0 0.0
    %70 = vmatpush1.msra.mxu0 0.0
    %71 = vmatprep.subr.mxu0 0.0
    %72 = vmatpush1.msra.mxu0 0.0
    %73 = vmatprep.subr.mxu0 0.0
    %74 = vmatpush1.msra.mxu0 0.0
    %75 = vmatprep.subr.mxu0 0.0
    %76 = vmatpush1.msra.mxu0 0.0
    %77 = vmatprep.subr.mxu0 0.0
    %78 = vmatpush1.msra.mxu0 0.0
    %79 = vmatprep.subr.mxu0 0.0
    %80 = vmatpush1.msra.mxu0 0.0
    %81 = vmatprep.subr.mxu0 0.0
    %82 = vmatpush1.msra.mxu0 0.0
    %83 = vmatprep.subr.mxu0 0.0
    %84 = vmatpush1.msra.mxu0 0.0
    %85 = vmatprep.subr.mxu0 0.0
    %86 = vmatpush1.msra.mxu0 0.0
    %87 = vmatprep.subr.mxu0 0.0
    %88 = vmatpush1.msra.mxu0 0.0
    %89 = vmatprep.subr.mxu0 0.0
    %90 = vmatpush1.msra.mxu0 0.0
    %91 = vmatprep.subr.mxu0 0.0
    %92 = vmatpush1.msra.mxu0 0.0
    %93 = vmatprep.subr.mxu0 0.0
    %94 = vmatpush1.msra.mxu0 0.0
    %95 = vmatprep.subr.mxu0 0.0
    %96 = vmatpush1.msra.mxu0 0.0
    %97 = vmatprep.subr.mxu0 0.0
    %98 = vmatpush1.msra.mxu0 0.0
    %99 = vmatprep.subr.mxu0 0.0
    %100 = vmatpush1.msra.mxu0 0.0
    %101 = vmatprep.subr.mxu0 0.0
    %102 = vmatpush1.msra.mxu0 0.0
    %103 = vmatprep.subr.mxu0 0.0
    %104 = vmatpush1.msra.mxu0 0.0
    %105 = vmatprep.subr.mxu0 0.0
    %106 = vmatpush1.msra.mxu0 0.0
    %107 = vmatprep.subr.mxu0 0.0
    %108 = vmatpush1.msra.mxu0 0.0
    %109 = vmatprep.subr.mxu0 0.0
    %110 = vmatpush1.msra.mxu0 0.0
    %111 = vmatprep.subr.mxu0 0.0
    %112 = vmatpush1.msra.mxu0 0.0
    %113 = vmatprep.subr.mxu0 0.0
    %114 = vmatpush1.msra.mxu0 0.0
    %115 = vmatprep.subr.mxu0 0.0
    %116 = vmatpush1.msra.mxu0 0.0
    %117 = vmatprep.subr.mxu0 0.0
    %118 = vmatpush1.msra.mxu0 0.0
    %119 = vmatprep.subr.mxu0 0.0
    %120 = vmatpush1.msra.mxu0 0.0
    %121 = vmatprep.mubr.f32.mxu0 0.0
    %122 = vmatmul.mubr.f32.gmra.mrb[0].mxu0 %v55
    %v123 = vpop.f32.mrb[0].mxu0
    %v124 = vadd.f32 %v51, %v123
    %v125 = vpop.f32.mrb[0].mxu0
    %126 = vdwg.mxu0
    %v127 = vtanh.pop %v124
    %v128 = vld [vmem:[%s3] sm:$0xff]
    %v129 = vld [vmem:[%s3 + $0x8] sm:$0xff]
    %v130 = vld [vmem:[%s3 + $0x10] sm:$0xff]
    %v131 = vld [vmem:[%s3 + $0x18] sm:$0xff]
    %v132 = vld [vmem:[%s3 + $0x20] sm:$0xff]
    %v133 = vld [vmem:[%s3 + $0x28] sm:$0xff]
    %v134 = vld [vmem:[%s3 + $0x30] sm:$0xff]
    %v135 = vld [vmem:[%s3 + $0x38] sm:$0xff]
    %v136 = vld [vmem:[%s4] sm:$0x1]
    %v138 = vlaneseq
    %v139 = vshrl.u32 %v138, 7
    %v140 = vsub.s32 0, %v139
    %v141 = vrot.slane %v136, %v140
    %vm143 = vcmask 523264
    %v145 = vsel %vm143, %v127, 0
    %147 = vmatprep.subr.mxu0 0.0
    %148 = vmatpush1.msra.mxu0 %v128
    %149 = vmatprep.subr.mxu0 0.0
    %150 = vmatpush1.msra.mxu0 %v129
    %151 = vmatprep.subr.mxu0 0.0
    %152 = vmatpush1.msra.mxu0 %v130
    %153 = vmatprep.subr.mxu0 0.0
    %154 = vmatpush1.msra.mxu0 %v131
    %155 = vmatprep.subr.mxu0 0.0
    %156 = vmatpush1.msra.mxu0 %v132
    %157 = vmatprep.subr.mxu0 0.0
    %158 = vmatpush1.msra.mxu0 %v133
    %159 = vmatprep.subr.mxu0 0.0
    %160 = vmatpush1.msra.mxu0 %v134
    %161 = vmatprep.subr.mxu0 0.0
    %162 = vmatpush1.msra.mxu0 %v135
    %163 = vmatprep.subr.mxu0 0.0
    %164 = vmatpush1.msra.mxu0 0.0
    %165 = vmatprep.subr.mxu0 0.0
    %166 = vmatpush1.msra.mxu0 0.0
    %167 = vmatprep.subr.mxu0 0.0
    %168 = vmatpush1.msra.mxu0 0.0
    %169 = vmatprep.subr.mxu0 0.0
    %170 = vmatpush1.msra.mxu0 0.0
    %171 = vmatprep.subr.mxu0 0.0
    %172 = vmatpush1.msra.mxu0 0.0
    %173 = vmatprep.subr.mxu0 0.0
    %174 = vmatpush1.msra.mxu0 0.0
    %175 = vmatprep.subr.mxu0 0.0
    %176 = vmatpush1.msra.mxu0 0.0
    %177 = vmatprep.subr.mxu0 0.0
    %178 = vmatpush1.msra.mxu0 0.0
    %179 = vmatprep.subr.mxu0 0.0
    %180 = vmatpush1.msra.mxu0 0.0
    %181 = vmatprep.subr.mxu0 0.0
    %182 = vmatpush1.msra.mxu0 0.0
    %183 = vmatprep.subr.mxu0 0.0
    %184 = vmatpush1.msra.mxu0 0.0
    %185 = vmatprep.subr.mxu0 0.0
    %186 = vmatpush1.msra.mxu0 0.0
    %187 = vmatprep.subr.mxu0 0.0
    %188 = vmatpush1.msra.mxu0 0.0
    %189 = vmatprep.subr.mxu0 0.0
    %190 = vmatpush1.msra.mxu0 0.0
    %191 = vmatprep.subr.mxu0 0.0
    %192 = vmatpush1.msra.mxu0 0.0
    %193 = vmatprep.subr.mxu0 0.0
    %194 = vmatpush1.msra.mxu0 0.0
    %195 = vmatprep.subr.mxu0 0.0
    %196 = vmatpush1.msra.mxu0 0.0
    %197 = vmatprep.subr.mxu0 0.0
    %198 = vmatpush1.msra.mxu0 0.0
    %199 = vmatprep.subr.mxu0 0.0
    %200 = vmatpush1.msra.mxu0 0.0
    %201 = vmatprep.subr.mxu0 0.0
    %202 = vmatpush1.msra.mxu0 0.0
    %203 = vmatprep.subr.mxu0 0.0
    %204 = vmatpush1.msra.mxu0 0.0
    %205 = vmatprep.subr.mxu0 0.0
    %206 = vmatpush1.msra.mxu0 0.0
    %207 = vmatprep.subr.mxu0 0.0
    %208 = vmatpush1.msra.mxu0 0.0
    %209 = vmatprep.subr.mxu0 0.0
    %210 = vmatpush1.msra.mxu0 0.0
    %211 = vmatprep.mubr.f32.mxu0 0.0
    %212 = vmatmul.mubr.f32.gmra.mrb[0].mxu0 %v145
    %v213 = vpop.f32.mrb[0].mxu0
    %v214 = vadd.f32 %v141, %v213
    %v215 = vpop.f32.mrb[0].mxu0
    %216 = vdwg.mxu0
    %v217 = vtanh.pop %v214
    %v218 = vld [vmem:[%s5] sm:$0xff]
    %v219 = vld [vmem:[%s5 + $0x8] sm:$0xff]
    %v220 = vld [vmem:[%s5 + $0x10] sm:$0xff]
    %v221 = vld [vmem:[%s5 + $0x18] sm:$0xff]
    %v222 = vld [vmem:[%s5 + $0x20] sm:$0xff]
    %v223 = vld [vmem:[%s5 + $0x28] sm:$0xff]
    %v224 = vld [vmem:[%s5 + $0x30] sm:$0xff]
    %v225 = vld [vmem:[%s5 + $0x38] sm:$0xff]
    %v226 = vld [vmem:[%s6] sm:$0x1]
    %v228 = vlaneseq
    %v229 = vshrl.u32 %v228, 7
    %v230 = vsub.s32 0, %v229
    %v231 = vrot.slane %v226, %v230
    %v234 = vsel %vm143, %v217, 0
    %236 = vmatprep.subr.mxu0 0.0
    %237 = vmatpush1.msra.mxu0 %v218
    %238 = vmatprep.subr.mxu0 0.0
    %239 = vmatpush1.msra.mxu0 %v219
    %240 = vmatprep.subr.mxu0 0.0
    %241 = vmatpush1.msra.mxu0 %v220
    %242 = vmatprep.subr.mxu0 0.0
    %243 = vmatpush1.msra.mxu0 %v221
    %244 = vmatprep.subr.mxu0 0.0
    %245 = vmatpush1.msra.mxu0 %v222
    %246 = vmatprep.subr.mxu0 0.0
    %247 = vmatpush1.msra.mxu0 %v223
    %248 = vmatprep.subr.mxu0 0.0
    %249 = vmatpush1.msra.mxu0 %v224
    %250 = vmatprep.subr.mxu0 0.0
    %251 = vmatpush1.msra.mxu0 %v225
    %252 = vmatprep.subr.mxu0 0.0
    %253 = vmatpush1.msra.mxu0 0.0
    %254 = vmatprep.subr.mxu0 0.0
    %255 = vmatpush1.msra.mxu0 0.0
    %256 = vmatprep.subr.mxu0 0.0
    %257 = vmatpush1.msra.mxu0 0.0
    %258 = vmatprep.subr.mxu0 0.0
    %259 = vmatpush1.msra.mxu0 0.0
    %260 = vmatprep.subr.mxu0 0.0
    %261 = vmatpush1.msra.mxu0 0.0
    %262 = vmatprep.subr.mxu0 0.0
    %263 = vmatpush1.msra.mxu0 0.0
    %264 = vmatprep.subr.mxu0 0.0
    %265 = vmatpush1.msra.mxu0 0.0
    %266 = vmatprep.subr.mxu0 0.0
    %267 = vmatpush1.msra.mxu0 0.0
    %268 = vmatprep.subr.mxu0 0.0
    %269 = vmatpush1.msra.mxu0 0.0
    %270 = vmatprep.subr.mxu0 0.0
    %271 = vmatpush1.msra.mxu0 0.0
    %272 = vmatprep.subr.mxu0 0.0
    %273 = vmatpush1.msra.mxu0 0.0
    %274 = vmatprep.subr.mxu0 0.0
    %275 = vmatpush1.msra.mxu0 0.0
    %276 = vmatprep.subr.mxu0 0.0
    %277 = vmatpush1.msra.mxu0 0.0
    %278 = vmatprep.subr.mxu0 0.0
    %279 = vmatpush1.msra.mxu0 0.0
    %280 = vmatprep.subr.mxu0 0.0
    %281 = vmatpush1.msra.mxu0 0.0
    %282 = vmatprep.subr.mxu0 0.0
    %283 = vmatpush1.msra.mxu0 0.0
    %284 = vmatprep.subr.mxu0 0.0
    %285 = vmatpush1.msra.mxu0 0.0
    %286 = vmatprep.subr.mxu0 0.0
    %287 = vmatpush1.msra.mxu0 0.0
    %288 = vmatprep.subr.mxu0 0.0
    %289 = vmatpush1.msra.mxu0 0.0
    %290 = vmatprep.subr.mxu0 0.0
    %291 = vmatpush1.msra.mxu0 0.0
    %292 = vmatprep.subr.mxu0 0.0
    %293 = vmatpush1.msra.mxu0 0.0
    %294 = vmatprep.subr.mxu0 0.0
    %295 = vmatpush1.msra.mxu0 0.0
    %296 = vmatprep.subr.mxu0 0.0
    %297 = vmatpush1.msra.mxu0 0.0
    %298 = vmatprep.subr.mxu0 0.0
    %299 = vmatpush1.msra.mxu0 0.0
    %300 = vmatprep.mubr.f32.mxu0 0.0
    %301 = vmatmul.mubr.f32.gmra.mrb[0].mxu0 %v234
    %v302 = vpop.f32.mrb[0].mxu0
    %v303 = vadd.f32 %v231, %v302
    %v304 = vpop.f32.mrb[0].mxu0
    %305 = vdwg.mxu0
    %v306 = vtanh.pop %v303
    %vm307 = vcmask 130048
    %308 = vst.msk [vmem:[#allocation5] sm:$0xff] %vm307, %v306
    // Predicated region
    $region34: #{mlp_forward.1} parent=1 // pred_check
      _
    $region35: #{mlp_forward.1} parent=1 // pred_check_branch
      %310 = sbr.rel (0) target = $region37
    $region36: #{mlp_forward.1} parent=1 // pred_region
      %s312 = ssub.s32 128, 128
      %313 = vsyncadd [#allocation4], %s312
      %s315 = sshll.u32 [#allocation5], 4
      %s316 = int_to_ptr.vmem [resolvable:$true] %s315
      %318 = dma.vmem_to_hbm [thread:$0]  %s316, 128, %s7, [#allocation4]
    $region37: #{mlp_forward.1} parent=1 // pred_fallthru
      _
    // Predicated region
    $region38: #{mlp_forward.1} parent=1 // pred_check
      _
    $region39: #{mlp_forward.1} parent=1 // pred_check_branch
      %320 = sbr.rel (0) target = $region41
    $region40: #{mlp_forward.1} parent=1 // pred_region
      %321 = dma.done [#allocation4], 128
    $region41: #{mlp_forward.1} parent=1 // pred_fallthru
      _
    %322 = vsyncpa [#allocation3], 1
    %323 = vsyncpa [#allocation4], 1

</llo_original>
